<compile_context>
chip_gen: v6e
topology: v6e:2x2x1
jax: 0.10.0
libtpu: 0.0.40
codegen_flags: <defaults>
</compile_context>

<pallas_src>
import functools

import jax
import jax.numpy as jnp
import numpy as np
from jax.experimental import pallas as pl
from jax.experimental.pallas import tpu as pltpu

# ---- logical shapes (stand-in for swin_base forward_features output (B, 49, 1024)) ----
B, L, D = 2, 8, 1024          # batch, tokens, feature dim
BOTTLENECK = 512              # ClassBlock num_bottleneck
CLASS_NUM = 128               # class_num
BN_EPS = 1e-5

LANE = 128                    # pad class dim to lane width


def _round_up(n, m):
    return (n + m - 1) // m * m


# ----------------------------------------------------------------------------
# Kernel: token pooling (sum, f32 accumulation) + single folded matmul + bias.
# ----------------------------------------------------------------------------
def head_kernel(x_ref, w_ref, b_ref, out_ref):
    # x_ref: (B, L, D) bf16.  Accumulate the token sum in f32 (1/L is folded
    # into W on the host, so a plain sum here is exactly the mean).
    pooled = jnp.sum(x_ref[...].astype(jnp.float32), axis=1)          # (B, D) f32
    # Single MXU matmul: bf16 operands, f32 accumulation; f32 bias add (VPU).
    logits = jnp.dot(pooled.astype(jnp.bfloat16), w_ref[...],
                     preferred_element_type=jnp.float32) + b_ref[...]  # (B, Cp) f32
    out_ref[...] = logits.astype(out_ref.dtype)


# ----------------------------------------------------------------------------
# One-time host-side parameter folding (outside the per-call jit).
# Everything after the token mean is affine at inference, so:
#   logits = mean(x) @ W1 + b1            (ClassBlock.Linear)
#            -> BN: h*scale + shift        scale = gamma*rsqrt(var+eps)
#                                          shift = (b1 - mean)*scale + beta
#            -> Dropout (identity)
#            -> @ W2 + b2                  (classifier Linear)
#   == sum(x) @ [ (1/L) * (W1 * scale) @ W2 ]  +  [ shift @ W2 + b2 ]
# ----------------------------------------------------------------------------
def prepare_params(w1, b1, gamma, beta, run_mean, run_var, w2, b2, num_tokens):
    inv_std = jax.lax.rsqrt(run_var + BN_EPS)                          # (1, 512)
    scale = gamma * inv_std                                            # (1, 512)
    shift = (b1 - run_mean) * scale + beta                             # (1, 512)

    w_full = ((w1 * scale) @ w2) * (1.0 / num_tokens)                  # (D, C) f32
    b_full = shift @ w2 + b2                                           # (1, C) f32

    c = w2.shape[1]
    cp = max(_round_up(c, LANE), LANE)
    w_pad = jnp.zeros((w1.shape[0], cp), jnp.float32).at[:, :c].set(w_full)
    b_pad = jnp.zeros((1, cp), jnp.float32).at[:, :c].set(b_full)
    # Weights in bf16 (halves HBM bytes, native MXU dtype); bias stays f32.
    return w_pad.astype(jnp.bfloat16), b_pad


# ----------------------------------------------------------------------------
# Per-call forward: just the kernel (no host-side weight work inside the jit).
# x is expected in bf16 (the backbone boundary would emit it that way).
# ----------------------------------------------------------------------------
@functools.partial(jax.jit, static_argnames=("class_num",))
def ft_net_swin_forward(x_bf16, w_folded, b_folded, *, class_num):
    b_ = x_bf16.shape[0]
    cp = w_folded.shape[1]
    out = pl.pallas_call(
        head_kernel,
        out_shape=jax.ShapeDtypeStruct((b_, cp), jnp.float32),
        in_specs=[pl.BlockSpec(memory_space=pltpu.MemorySpace.VMEM)] * 3,
        out_specs=pl.BlockSpec(memory_space=pltpu.MemorySpace.VMEM),
    )(x_bf16, w_folded, b_folded)
    return out[:, :class_num]


# ----------------------------------------------------------------------------
# Parameter init matching the PyTorch module's initializers.
# ----------------------------------------------------------------------------
def init_params(key):
    k1, k2, k3 = jax.random.split(key, 3)
    # ClassBlock.Linear: kaiming_normal_(a=0, mode='fan_out') on torch (512, 1024)
    #   -> std = sqrt(2 / fan_out) = sqrt(2 / 512); bias = 0
    std1 = float(np.sqrt(2.0 / BOTTLENECK))
    w1 = jax.random.normal(k1, (D, BOTTLENECK), jnp.float32) * std1    # stored (in, out)
    b1 = jnp.zeros((1, BOTTLENECK), jnp.float32)
    # ClassBlock.bnorm: weight ~ N(1.0, 0.02), bias = 0; fresh running stats (0, 1)
    gamma = 1.0 + 0.02 * jax.random.normal(k2, (1, BOTTLENECK), jnp.float32)
    beta = jnp.zeros((1, BOTTLENECK), jnp.float32)
    run_mean = jnp.zeros((1, BOTTLENECK), jnp.float32)
    run_var = jnp.ones((1, BOTTLENECK), jnp.float32)
    # classifier Linear: weight ~ N(0, 0.001), bias = 0
    w2 = jax.random.normal(k3, (BOTTLENECK, CLASS_NUM), jnp.float32) * 0.001
    b2 = jnp.zeros((1, CLASS_NUM), jnp.float32)
    return w1, b1, gamma, beta, run_mean, run_var, w2, b2


def reference(x, w1, b1, gamma, beta, run_mean, run_var, w2, b2):
    # Exact module semantics in f32: mean -> Linear -> BN(inference) -> Linear.
    pooled = jnp.mean(x, axis=1)
    h = pooled @ w1 + b1
    h = (h - run_mean) / jnp.sqrt(run_var + BN_EPS) * gamma + beta
    return h @ w2 + b2


if __name__ == "__main__":
    key = jax.random.PRNGKey(0)
    kx, kp = jax.random.split(key)
    # x stands in for model.forward_features(image) output: (B, tokens, 1024)
    x = jax.random.normal(kx, (B, L, D), jnp.float32)
    params = init_params(kp)

    # One-time parameter folding (outside the per-call jit).
    w_folded, b_folded = prepare_params(*params, num_tokens=L)
    w_folded, b_folded = jax.block_until_ready((w_folded, b_folded))

    # Activations arrive in bf16 at the head boundary.
    x_bf16 = x.astype(jnp.bfloat16)

    out = ft_net_swin_forward(x_bf16, w_folded, b_folded, class_num=CLASS_NUM)
    out = jax.block_until_ready(out)

    ref = reference(x, *params)
    # Tolerance covers bf16 activations + bf16 folded weights (f32 accumulation).
    np.testing.assert_allclose(np.asarray(out), np.asarray(ref),
                               rtol=3e-2, atol=2e-3)
    print("KERNEL_OK")
</pallas_src>

<mosaic_0001>
module attributes {stable_mosaic.version = 11 : i64} {
  func.func @head_kernel(%arg0: memref<2x8x1024xbf16, #tpu.memory_space<vmem>>, %arg1: memref<1024x128xbf16, #tpu.memory_space<vmem>>, %arg2: memref<1x128xf32, #tpu.memory_space<vmem>>, %arg3: memref<2x128xf32, #tpu.memory_space<vmem>>) attributes {dimension_semantics = [], scalar_prefetch = 0 : i64, scratch_operands = 0 : i64, tpu.core_type = #tpu.core_type<tc>} {
    %c0 = arith.constant 0 : index
    %c0_0 = arith.constant 0 : index
    %c0_1 = arith.constant 0 : index
    %0 = vector.load %arg0[%c0, %c0_0, %c0_1] : memref<2x8x1024xbf16, #tpu.memory_space<vmem>>, vector<2x8x1024xbf16>
    %1 = arith.extf %0 : vector<2x8x1024xbf16> to vector<2x8x1024xf32>
    %cst = arith.constant dense<0.000000e+00> : vector<2x1024xf32>
    %2 = vector.multi_reduction <add>, %1, %cst [1] : vector<2x8x1024xf32> to vector<2x1024xf32>
    %3 = arith.truncf %2 : vector<2x1024xf32> to vector<2x1024xbf16>
    %c0_2 = arith.constant 0 : index
    %c0_3 = arith.constant 0 : index
    %4 = vector.load %arg1[%c0_2, %c0_3] : memref<1024x128xbf16, #tpu.memory_space<vmem>>, vector<1024x128xbf16>
    %cst_4 = arith.constant dense<0.000000e+00> : vector<2x128xf32>
    %5 = tpu.matmul %3, %4, %cst_4 {dimension_numbers = #tpu.dot_dimension_numbers<[1], [0], [0], [1], [0, 0, 1, 1], [], []>} : vector<2x1024xbf16>, vector<1024x128xbf16>, vector<2x128xf32> -> vector<2x128xf32>
    %c0_5 = arith.constant 0 : index
    %c0_6 = arith.constant 0 : index
    %6 = vector.load %arg2[%c0_5, %c0_6] : memref<1x128xf32, #tpu.memory_space<vmem>>, vector<1x128xf32>
    %7 = vector.broadcast %6 : vector<1x128xf32> to vector<2x128xf32>
    %8 = arith.addf %5, %7 : vector<2x128xf32>
    %c0_7 = arith.constant 0 : index
    %c0_8 = arith.constant 0 : index
    %9 = vector.load %arg3[%c0_7, %c0_8] : memref<2x128xf32, #tpu.memory_space<vmem>>, vector<2x128xf32>
    tpu.vector_store %arg3[%c0_7, %c0_8], %8 {strides = array<i32>} : memref<2x128xf32, #tpu.memory_space<vmem>>, vector<2x128xf32>,
    return
  }
}

</mosaic_0001>

<llo_original>
// kernel: ft_net_swin_forward.1
$region0: #{ft_net_swin_forward.1}
  #allocation0 [shape = 'u32[]', space=smem, size = 0x4, offset = 0x4, fixed_abs, tag = 'smem constant byte address 0x4 - core index']
  #allocation1 [shape = 'u32[144,128]{1,0:T(1,128)}', space=vmem, size = 0x12000, scoped, tag = 'internal scratch']
  %s0 = inlined_call_operand.hbm [shape: bf16[2,8,1024], index: 0, kind: input, shape index: {}]
  %s1 = inlined_call_operand.hbm [shape: bf16[1024,128], index: 1, kind: input, shape index: {}]
  %s2 = inlined_call_operand.vmem [shape: f32[1,128], index: 2, kind: input, shape index: {}]
  %s3 = inlined_call_operand.hbm [shape: f32[2,128], index: 3, kind: output, shape index: {}]
  %s4 = sld [smem:[#allocation0]]
  $region30: #{ft_net_swin_forward.1} parent=0
    _
  %s6 = ssub.s32 1, %s4
  %s7 = scalar_select 0, %s6, %s4
  $region1: #{ft_net_swin_forward.1} parent=0
    #allocation2 [shape = 'u8[32768]{0}', space=vmem, size = 0x8000, scoped, tag = 'input window, operand 0, single buffered']
    #allocation3 [shape = 's32[1]{0}', space=sflag, size = 0x4, scoped, tag = 'scoped memory for ft_net_swin_forward.1']
    #allocation4 [shape = 's32[1]{0}', space=sflag, size = 0x4, scoped, tag = 'scoped memory for ft_net_swin_forward.1']
    #allocation5 [shape = 'u8[262144]{0}', space=vmem, size = 0x40000, scoped, tag = 'input window, operand 1, single buffered']
    #allocation6 [shape = 's32[1]{0}', space=sflag, size = 0x4, scoped, tag = 'scoped memory for ft_net_swin_forward.1']
    #allocation7 [shape = 'u8[1024]{0}', space=vmem, size = 0x400, scoped, tag = 'output window, operand 0, single buffered']
    %8 = vsyncpa [#allocation3], 0
    %9 = vsyncpa [#allocation6], 0
    %10 = vsyncpa [#allocation4], 0
    // Predicated region
    $region2: #{ft_net_swin_forward.1} parent=1 // pred_check
      _
    $region3: #{ft_net_swin_forward.1} parent=1 // pred_check_branch
      %12 = sbr.rel (0) target = $region5
    $region4: #{ft_net_swin_forward.1} parent=1 // pred_region
      %s14 = ssub.s32 1024, 1024
      %15 = vsyncadd [#allocation3], %s14
      %s16 = sshll.u32 [#allocation2], 4
      %s17 = int_to_ptr.vmem [resolvable:$true] %s16
      %22 = dma.hbm_to_vmem [thread:$0]  %s0, 1024, %s17, [#allocation3], 512, 512, 32
    $region5: #{ft_net_swin_forward.1} parent=1 // pred_fallthru
      _
    // Predicated region
    $region6: #{ft_net_swin_forward.1} parent=1 // pred_check
      _
    $region7: #{ft_net_swin_forward.1} parent=1 // pred_check_branch
      %24 = sbr.rel (0) target = $region9
    $region8: #{ft_net_swin_forward.1} parent=1 // pred_region
      %s26 = ssub.s32 8192, 8192
      %27 = vsyncadd [#allocation6], %s26
      %s28 = sshll.u32 [#allocation5], 4
      %s29 = int_to_ptr.vmem [resolvable:$true] %s28
      %34 = dma.hbm_to_vmem [thread:$0]  %s1, 8192, %s29, [#allocation6], 64, 64, 4
    $region9: #{ft_net_swin_forward.1} parent=1 // pred_fallthru
      _
    // Predicated region
    $region10: #{ft_net_swin_forward.1} parent=1 // pred_check
      _
    $region11: #{ft_net_swin_forward.1} parent=1 // pred_check_branch
      %36 = sbr.rel (0) target = $region13
    $region12: #{ft_net_swin_forward.1} parent=1 // pred_region
      _
    $region13: #{ft_net_swin_forward.1} parent=1 // pred_fallthru
      _
    // Predicated region
    $region14: #{ft_net_swin_forward.1} parent=1 // pred_check
      _
    $region15: #{ft_net_swin_forward.1} parent=1 // pred_check_branch
      %38 = sbr.rel (0) target = $region17
    $region16: #{ft_net_swin_forward.1} parent=1 // pred_region
      %39 = dma.done [#allocation3], 1024
    $region17: #{ft_net_swin_forward.1} parent=1 // pred_fallthru
      _
    // Predicated region
    $region18: #{ft_net_swin_forward.1} parent=1 // pred_check
      _
    $region19: #{ft_net_swin_forward.1} parent=1 // pred_check_branch
      %41 = sbr.rel (0) target = $region21
    $region20: #{ft_net_swin_forward.1} parent=1 // pred_region
      %42 = dma.done [#allocation6], 8192
    $region21: #{ft_net_swin_forward.1} parent=1 // pred_fallthru
      _
    %v44 = vld [vmem:[#allocation2] sm:$0xff]
    %v45 = vld [vmem:[#allocation2 + $0x8] sm:$0xff]
    %v46 = vld [vmem:[#allocation2 + $0x10] sm:$0xff]
    %v47 = vld [vmem:[#allocation2 + $0x18] sm:$0xff]
    %v48 = vld [vmem:[#allocation2 + $0x20] sm:$0xff]
    %v49 = vld [vmem:[#allocation2 + $0x28] sm:$0xff]
    %v50 = vld [vmem:[#allocation2 + $0x30] sm:$0xff]
    %v51 = vld [vmem:[#allocation2 + $0x38] sm:$0xff]
    %v52 = vunpack.c.l.bf16 %v44
    %v53 = vunpack.c.h.bf16 %v44
    %v54 = vunpack.c.l.bf16 %v45
    %v55 = vunpack.c.h.bf16 %v45
    %v56 = vunpack.c.l.bf16 %v46
    %v57 = vunpack.c.h.bf16 %v46
    %v58 = vunpack.c.l.bf16 %v47
    %v59 = vunpack.c.h.bf16 %v47
    %v60 = vunpack.c.l.bf16 %v48
    %v61 = vunpack.c.h.bf16 %v48
    %v62 = vunpack.c.l.bf16 %v49
    %v63 = vunpack.c.h.bf16 %v49
    %v64 = vunpack.c.l.bf16 %v50
    %v65 = vunpack.c.h.bf16 %v50
    %v66 = vunpack.c.l.bf16 %v51
    %v67 = vunpack.c.h.bf16 %v51
    %v68 = vrot.slane %v52, 4
    %v69 = vadd.f32 %v52, %v68
    %v70 = vrot.slane %v69, 2
    %v71 = vadd.f32 %v69, %v70
    %v72 = vrot.slane %v71, 1
    %v73 = vadd.f32 %v71, %v72
    %v74 = vrot.slane %v53, 4
    %v75 = vadd.f32 %v53, %v74
    %v76 = vrot.slane %v75, 2
    %v77 = vadd.f32 %v75, %v76
    %v78 = vrot.slane %v77, 1
    %v79 = vadd.f32 %v77, %v78
    %v80 = vrot.slane %v54, 4
    %v81 = vadd.f32 %v54, %v80
    %v82 = vrot.slane %v81, 2
    %v83 = vadd.f32 %v81, %v82
    %v84 = vrot.slane %v83, 1
    %v85 = vadd.f32 %v83, %v84
    %v86 = vrot.slane %v55, 4
    %v87 = vadd.f32 %v55, %v86
    %v88 = vrot.slane %v87, 2
    %v89 = vadd.f32 %v87, %v88
    %v90 = vrot.slane %v89, 1
    %v91 = vadd.f32 %v89, %v90
    %v92 = vrot.slane %v56, 4
    %v93 = vadd.f32 %v56, %v92
    %v94 = vrot.slane %v93, 2
    %v95 = vadd.f32 %v93, %v94
    %v96 = vrot.slane %v95, 1
    %v97 = vadd.f32 %v95, %v96
    %v98 = vrot.slane %v57, 4
    %v99 = vadd.f32 %v57, %v98
    %v100 = vrot.slane %v99, 2
    %v101 = vadd.f32 %v99, %v100
    %v102 = vrot.slane %v101, 1
    %v103 = vadd.f32 %v101, %v102
    %v104 = vrot.slane %v58, 4
    %v105 = vadd.f32 %v58, %v104
    %v106 = vrot.slane %v105, 2
    %v107 = vadd.f32 %v105, %v106
    %v108 = vrot.slane %v107, 1
    %v109 = vadd.f32 %v107, %v108
    %v110 = vrot.slane %v59, 4
    %v111 = vadd.f32 %v59, %v110
    %v112 = vrot.slane %v111, 2
    %v113 = vadd.f32 %v111, %v112
    %v114 = vrot.slane %v113, 1
    %v115 = vadd.f32 %v113, %v114
    %v116 = vrot.slane %v60, 4
    %v117 = vadd.f32 %v60, %v116
    %v118 = vrot.slane %v117, 2
    %v119 = vadd.f32 %v117, %v118
    %v120 = vrot.slane %v119, 1
    %v121 = vadd.f32 %v119, %v120
    %v122 = vrot.slane %v61, 4
    %v123 = vadd.f32 %v61, %v122
    %v124 = vrot.slane %v123, 2
    %v125 = vadd.f32 %v123, %v124
    %v126 = vrot.slane %v125, 1
    %v127 = vadd.f32 %v125, %v126
    %v128 = vrot.slane %v62, 4
    %v129 = vadd.f32 %v62, %v128
    %v130 = vrot.slane %v129, 2
    %v131 = vadd.f32 %v129, %v130
    %v132 = vrot.slane %v131, 1
    %v133 = vadd.f32 %v131, %v132
    %v134 = vrot.slane %v63, 4
    %v135 = vadd.f32 %v63, %v134
    %v136 = vrot.slane %v135, 2
    %v137 = vadd.f32 %v135, %v136
    %v138 = vrot.slane %v137, 1
    %v139 = vadd.f32 %v137, %v138
    %v140 = vrot.slane %v64, 4
    %v141 = vadd.f32 %v64, %v140
    %v142 = vrot.slane %v141, 2
    %v143 = vadd.f32 %v141, %v142
    %v144 = vrot.slane %v143, 1
    %v145 = vadd.f32 %v143, %v144
    %v146 = vrot.slane %v65, 4
    %v147 = vadd.f32 %v65, %v146
    %v148 = vrot.slane %v147, 2
    %v149 = vadd.f32 %v147, %v148
    %v150 = vrot.slane %v149, 1
    %v151 = vadd.f32 %v149, %v150
    %v152 = vrot.slane %v66, 4
    %v153 = vadd.f32 %v66, %v152
    %v154 = vrot.slane %v153, 2
    %v155 = vadd.f32 %v153, %v154
    %v156 = vrot.slane %v155, 1
    %v157 = vadd.f32 %v155, %v156
    %v158 = vrot.slane %v67, 4
    %v159 = vadd.f32 %v67, %v158
    %v160 = vrot.slane %v159, 2
    %v161 = vadd.f32 %v159, %v160
    %v162 = vrot.slane %v161, 1
    %v163 = vadd.f32 %v161, %v162
    %v164 = vpack.c.bf16 %v73, %v73
    %v165 = vpack.c.bf16 %v79, %v79
    %v166 = vpack.c.bf16 %v85, %v85
    %v167 = vpack.c.bf16 %v91, %v91
    %v168 = vpack.c.bf16 %v97, %v97
    %v169 = vpack.c.bf16 %v103, %v103
    %v170 = vpack.c.bf16 %v109, %v109
    %v171 = vpack.c.bf16 %v115, %v115
    %v172 = vpack.c.bf16 %v121, %v121
    %v173 = vpack.c.bf16 %v127, %v127
    %v174 = vpack.c.bf16 %v133, %v133
    %v175 = vpack.c.bf16 %v139, %v139
    %v176 = vpack.c.bf16 %v145, %v145
    %v177 = vpack.c.bf16 %v151, %v151
    %v178 = vpack.c.bf16 %v157, %v157
    %v179 = vpack.c.bf16 %v163, %v163
    %v180 = vld [vmem:[#allocation5] sm:$0xf]
    %v181 = vld [vmem:[#allocation5 + $0x4] sm:$0xf]
    %v182 = vld [vmem:[#allocation5 + $0x8] sm:$0xf]
    %v183 = vld [vmem:[#allocation5 + $0xc] sm:$0xf]
    %v184 = vld [vmem:[#allocation5 + $0x10] sm:$0xf]
    %v185 = vld [vmem:[#allocation5 + $0x14] sm:$0xf]
    %v186 = vld [vmem:[#allocation5 + $0x18] sm:$0xf]
    %v187 = vld [vmem:[#allocation5 + $0x1c] sm:$0xf]
    %v188 = vld [vmem:[#allocation5 + $0x20] sm:$0xf]
    %v189 = vld [vmem:[#allocation5 + $0x24] sm:$0xf]
    %v190 = vld [vmem:[#allocation5 + $0x28] sm:$0xf]
    %v191 = vld [vmem:[#allocation5 + $0x2c] sm:$0xf]
    %v192 = vld [vmem:[#allocation5 + $0x30] sm:$0xf]
    %v193 = vld [vmem:[#allocation5 + $0x34] sm:$0xf]
    %v194 = vld [vmem:[#allocation5 + $0x38] sm:$0xf]
    %v195 = vld [vmem:[#allocation5 + $0x3c] sm:$0xf]
    %v196 = vld [vmem:[#allocation5 + $0x40] sm:$0xf]
    %v197 = vld [vmem:[#allocation5 + $0x44] sm:$0xf]
    %v198 = vld [vmem:[#allocation5 + $0x48] sm:$0xf]
    %v199 = vld [vmem:[#allocation5 + $0x4c] sm:$0xf]
    %v200 = vld [vmem:[#allocation5 + $0x50] sm:$0xf]
    %v201 = vld [vmem:[#allocation5 + $0x54] sm:$0xf]
    %v202 = vld [vmem:[#allocation5 + $0x58] sm:$0xf]
    %v203 = vld [vmem:[#allocation5 + $0x5c] sm:$0xf]
    %v204 = vld [vmem:[#allocation5 + $0x60] sm:$0xf]
    %v205 = vld [vmem:[#allocation5 + $0x64] sm:$0xf]
    %v206 = vld [vmem:[#allocation5 + $0x68] sm:$0xf]
    %v207 = vld [vmem:[#allocation5 + $0x6c] sm:$0xf]
    %v208 = vld [vmem:[#allocation5 + $0x70] sm:$0xf]
    %v209 = vld [vmem:[#allocation5 + $0x74] sm:$0xf]
    %v210 = vld [vmem:[#allocation5 + $0x78] sm:$0xf]
    %v211 = vld [vmem:[#allocation5 + $0x7c] sm:$0xf]
    %v212 = vld [vmem:[#allocation5 + $0x80] sm:$0xf]
    %v213 = vld [vmem:[#allocation5 + $0x84] sm:$0xf]
    %v214 = vld [vmem:[#allocation5 + $0x88] sm:$0xf]
    %v215 = vld [vmem:[#allocation5 + $0x8c] sm:$0xf]
    %v216 = vld [vmem:[#allocation5 + $0x90] sm:$0xf]
    %v217 = vld [vmem:[#allocation5 + $0x94] sm:$0xf]
    %v218 = vld [vmem:[#allocation5 + $0x98] sm:$0xf]
    %v219 = vld [vmem:[#allocation5 + $0x9c] sm:$0xf]
    %v220 = vld [vmem:[#allocation5 + $0xa0] sm:$0xf]
    %v221 = vld [vmem:[#allocation5 + $0xa4] sm:$0xf]
    %v222 = vld [vmem:[#allocation5 + $0xa8] sm:$0xf]
    %v223 = vld [vmem:[#allocation5 + $0xac] sm:$0xf]
    %v224 = vld [vmem:[#allocation5 + $0xb0] sm:$0xf]
    %v225 = vld [vmem:[#allocation5 + $0xb4] sm:$0xf]
    %v226 = vld [vmem:[#allocation5 + $0xb8] sm:$0xf]
    %v227 = vld [vmem:[#allocation5 + $0xbc] sm:$0xf]
    %v228 = vld [vmem:[#allocation5 + $0xc0] sm:$0xf]
    %v229 = vld [vmem:[#allocation5 + $0xc4] sm:$0xf]
    %v230 = vld [vmem:[#allocation5 + $0xc8] sm:$0xf]
    %v231 = vld [vmem:[#allocation5 + $0xcc] sm:$0xf]
    %v232 = vld [vmem:[#allocation5 + $0xd0] sm:$0xf]
    %v233 = vld [vmem:[#allocation5 + $0xd4] sm:$0xf]
    %v234 = vld [vmem:[#allocation5 + $0xd8] sm:$0xf]
    %v235 = vld [vmem:[#allocation5 + $0xdc] sm:$0xf]
    %v236 = vld [vmem:[#allocation5 + $0xe0] sm:$0xf]
    %v237 = vld [vmem:[#allocation5 + $0xe4] sm:$0xf]
    %v238 = vld [vmem:[#allocation5 + $0xe8] sm:$0xf]
    %v239 = vld [vmem:[#allocation5 + $0xec] sm:$0xf]
    %v240 = vld [vmem:[#allocation5 + $0xf0] sm:$0xf]
    %v241 = vld [vmem:[#allocation5 + $0xf4] sm:$0xf]
    %v242 = vld [vmem:[#allocation5 + $0xf8] sm:$0xf]
    %v243 = vld [vmem:[#allocation5 + $0xfc] sm:$0xf]
    %v244 = vld [vmem:[#allocation5 + $0x100] sm:$0xf]
    %v245 = vld [vmem:[#allocation5 + $0x104] sm:$0xf]
    %v246 = vld [vmem:[#allocation5 + $0x108] sm:$0xf]
    %v247 = vld [vmem:[#allocation5 + $0x10c] sm:$0xf]
    %v248 = vld [vmem:[#allocation5 + $0x110] sm:$0xf]
    %v249 = vld [vmem:[#allocation5 + $0x114] sm:$0xf]
    %v250 = vld [vmem:[#allocation5 + $0x118] sm:$0xf]
    %v251 = vld [vmem:[#allocation5 + $0x11c] sm:$0xf]
    %v252 = vld [vmem:[#allocation5 + $0x120] sm:$0xf]
    %v253 = vld [vmem:[#allocation5 + $0x124] sm:$0xf]
    %v254 = vld [vmem:[#allocation5 + $0x128] sm:$0xf]
    %v255 = vld [vmem:[#allocation5 + $0x12c] sm:$0xf]
    %v256 = vld [vmem:[#allocation5 + $0x130] sm:$0xf]
    %v257 = vld [vmem:[#allocation5 + $0x134] sm:$0xf]
    %v258 = vld [vmem:[#allocation5 + $0x138] sm:$0xf]
    %v259 = vld [vmem:[#allocation5 + $0x13c] sm:$0xf]
    %v260 = vld [vmem:[#allocation5 + $0x140] sm:$0xf]
    %v261 = vld [vmem:[#allocation5 + $0x144] sm:$0xf]
    %v262 = vld [vmem:[#allocation5 + $0x148] sm:$0xf]
    %v263 = vld [vmem:[#allocation5 + $0x14c] sm:$0xf]
    %v264 = vld [vmem:[#allocation5 + $0x150] sm:$0xf]
    %v265 = vld [vmem:[#allocation5 + $0x154] sm:$0xf]
    %v266 = vld [vmem:[#allocation5 + $0x158] sm:$0xf]
    %v267 = vld [vmem:[#allocation5 + $0x15c] sm:$0xf]
    %v268 = vld [vmem:[#allocation5 + $0x160] sm:$0xf]
    %v269 = vld [vmem:[#allocation5 + $0x164] sm:$0xf]
    %v270 = vld [vmem:[#allocation5 + $0x168] sm:$0xf]
    %v271 = vld [vmem:[#allocation5 + $0x16c] sm:$0xf]
    %v272 = vld [vmem:[#allocation5 + $0x170] sm:$0xf]
    %v273 = vld [vmem:[#allocation5 + $0x174] sm:$0xf]
    %v274 = vld [vmem:[#allocation5 + $0x178] sm:$0xf]
    %v275 = vld [vmem:[#allocation5 + $0x17c] sm:$0xf]
    %v276 = vld [vmem:[#allocation5 + $0x180] sm:$0xf]
    %v277 = vld [vmem:[#allocation5 + $0x184] sm:$0xf]
    %v278 = vld [vmem:[#allocation5 + $0x188] sm:$0xf]
    %v279 = vld [vmem:[#allocation5 + $0x18c] sm:$0xf]
    %v280 = vld [vmem:[#allocation5 + $0x190] sm:$0xf]
    %v281 = vld [vmem:[#allocation5 + $0x194] sm:$0xf]
    %v282 = vld [vmem:[#allocation5 + $0x198] sm:$0xf]
    %v283 = vld [vmem:[#allocation5 + $0x19c] sm:$0xf]
    %v284 = vld [vmem:[#allocation5 + $0x1a0] sm:$0xf]
    %v285 = vld [vmem:[#allocation5 + $0x1a4] sm:$0xf]
    %v286 = vld [vmem:[#allocation5 + $0x1a8] sm:$0xf]
    %v287 = vld [vmem:[#allocation5 + $0x1ac] sm:$0xf]
    %v288 = vld [vmem:[#allocation5 + $0x1b0] sm:$0xf]
    %v289 = vld [vmem:[#allocation5 + $0x1b4] sm:$0xf]
    %v290 = vld [vmem:[#allocation5 + $0x1b8] sm:$0xf]
    %v291 = vld [vmem:[#allocation5 + $0x1bc] sm:$0xf]
    %v292 = vld [vmem:[#allocation5 + $0x1c0] sm:$0xf]
    %v293 = vld [vmem:[#allocation5 + $0x1c4] sm:$0xf]
    %v294 = vld [vmem:[#allocation5 + $0x1c8] sm:$0xf]
    %v295 = vld [vmem:[#allocation5 + $0x1cc] sm:$0xf]
    %v296 = vld [vmem:[#allocation5 + $0x1d0] sm:$0xf]
    %v297 = vld [vmem:[#allocation5 + $0x1d4] sm:$0xf]
    %v298 = vld [vmem:[#allocation5 + $0x1d8] sm:$0xf]
    %v299 = vld [vmem:[#allocation5 + $0x1dc] sm:$0xf]
    %v300 = vld [vmem:[#allocation5 + $0x1e0] sm:$0xf]
    %v301 = vld [vmem:[#allocation5 + $0x1e4] sm:$0xf]
    %v302 = vld [vmem:[#allocation5 + $0x1e8] sm:$0xf]
    %v303 = vld [vmem:[#allocation5 + $0x1ec] sm:$0xf]
    %v304 = vld [vmem:[#allocation5 + $0x1f0] sm:$0xf]
    %v305 = vld [vmem:[#allocation5 + $0x1f4] sm:$0xf]
    %v306 = vld [vmem:[#allocation5 + $0x1f8] sm:$0xf]
    %v307 = vld [vmem:[#allocation5 + $0x1fc] sm:$0xf]
    %v308 = vld [vmem:[%s2] sm:$0x1]
    %v310 = vlaneseq
    %v311 = vshrl.u32 %v310, 7
    %v312 = vsub.s32 0, %v311
    %v313 = vrot.slane %v308, %v312
    %v331 = vunpack.c.l.b16 %v164
    %v332 = vunpack.c.l.b16 %v165
    %v333 = vunpack.c.l.b16 %v166
    %v334 = vunpack.c.l.b16 %v167
    %v335 = vunpack.c.l.b16 %v168
    %v336 = vunpack.c.l.b16 %v169
    %v337 = vunpack.c.l.b16 %v170
    %v338 = vunpack.c.l.b16 %v171
    %v339 = vunpack.c.l.b16 %v172
    %v340 = vunpack.c.l.b16 %v173
    %v341 = vunpack.c.l.b16 %v174
    %v342 = vunpack.c.l.b16 %v175
    %v343 = vunpack.c.l.b16 %v176
    %v344 = vunpack.c.l.b16 %v177
    %v345 = vunpack.c.l.b16 %v178
    %v346 = vunpack.c.l.b16 %v179
    %vm347 = vcmask 1041409
    %v348 = vsel %vm347, %v339, %v331
    %v349 = vsel %vm347, %v340, %v332
    %v350 = vsel %vm347, %v341, %v333
    %v351 = vsel %vm347, %v342, %v334
    %v352 = vsel %vm347, %v343, %v335
    %v353 = vsel %vm347, %v344, %v336
    %v354 = vsel %vm347, %v345, %v337
    %v355 = vsel %vm347, %v346, %v338
    %v356 = vpack.c.b16 %v348, %v348
    %v357 = vpack.c.b16 %v349, %v349
    %v358 = vpack.c.b16 %v350, %v350
    %v359 = vpack.c.b16 %v351, %v351
    %v360 = vpack.c.b16 %v352, %v352
    %v361 = vpack.c.b16 %v353, %v353
    %v362 = vpack.c.b16 %v354, %v354
    %v363 = vpack.c.b16 %v355, %v355
    %v500 = vunpack.c.l.b16 %v180
    %v501 = vunpack.c.l.b16 %v181
    %v502 = vunpack.c.l.b16 %v182
    %v503 = vunpack.c.l.b16 %v183
    %v504 = vunpack.c.l.b16 %v184
    %v505 = vunpack.c.l.b16 %v185
    %v506 = vunpack.c.l.b16 %v186
    %v507 = vunpack.c.l.b16 %v187
    %v508 = vunpack.c.l.b16 %v188
    %v509 = vunpack.c.l.b16 %v189
    %v510 = vunpack.c.l.b16 %v190
    %v511 = vunpack.c.l.b16 %v191
    %v512 = vunpack.c.l.b16 %v192
    %v513 = vunpack.c.l.b16 %v193
    %v514 = vunpack.c.l.b16 %v194
    %v515 = vunpack.c.l.b16 %v195
    %v516 = vunpack.c.l.b16 %v196
    %v517 = vunpack.c.l.b16 %v197
    %v518 = vunpack.c.l.b16 %v198
    %v519 = vunpack.c.l.b16 %v199
    %v520 = vunpack.c.l.b16 %v200
    %v521 = vunpack.c.l.b16 %v201
    %v522 = vunpack.c.l.b16 %v202
    %v523 = vunpack.c.l.b16 %v203
    %v524 = vunpack.c.l.b16 %v204
    %v525 = vunpack.c.l.b16 %v205
    %v526 = vunpack.c.l.b16 %v206
    %v527 = vunpack.c.l.b16 %v207
    %v528 = vunpack.c.l.b16 %v208
    %v529 = vunpack.c.l.b16 %v209
    %v530 = vunpack.c.l.b16 %v210
    %v531 = vunpack.c.l.b16 %v211
    %v532 = vunpack.c.l.b16 %v212
    %v533 = vunpack.c.l.b16 %v213
    %v534 = vunpack.c.l.b16 %v214
    %v535 = vunpack.c.l.b16 %v215
    %v536 = vunpack.c.l.b16 %v216
    %v537 = vunpack.c.l.b16 %v217
    %v538 = vunpack.c.l.b16 %v218
    %v539 = vunpack.c.l.b16 %v219
    %v540 = vunpack.c.l.b16 %v220
    %v541 = vunpack.c.l.b16 %v221
    %v542 = vunpack.c.l.b16 %v222
    %v543 = vunpack.c.l.b16 %v223
    %v544 = vunpack.c.l.b16 %v224
    %v545 = vunpack.c.l.b16 %v225
    %v546 = vunpack.c.l.b16 %v226
    %v547 = vunpack.c.l.b16 %v227
    %v548 = vunpack.c.l.b16 %v228
    %v549 = vunpack.c.l.b16 %v229
    %v550 = vunpack.c.l.b16 %v230
    %v551 = vunpack.c.l.b16 %v231
    %v552 = vunpack.c.l.b16 %v232
    %v553 = vunpack.c.l.b16 %v233
    %v554 = vunpack.c.l.b16 %v234
    %v555 = vunpack.c.l.b16 %v235
    %v556 = vunpack.c.l.b16 %v236
    %v557 = vunpack.c.l.b16 %v237
    %v558 = vunpack.c.l.b16 %v238
    %v559 = vunpack.c.l.b16 %v239
    %v560 = vunpack.c.l.b16 %v240
    %v561 = vunpack.c.l.b16 %v241
    %v562 = vunpack.c.l.b16 %v242
    %v563 = vunpack.c.l.b16 %v243
    %v564 = vunpack.c.l.b16 %v244
    %v565 = vunpack.c.l.b16 %v245
    %v566 = vunpack.c.l.b16 %v246
    %v567 = vunpack.c.l.b16 %v247
    %v568 = vunpack.c.l.b16 %v248
    %v569 = vunpack.c.l.b16 %v249
    %v570 = vunpack.c.l.b16 %v250
    %v571 = vunpack.c.l.b16 %v251
    %v572 = vunpack.c.l.b16 %v252
    %v573 = vunpack.c.l.b16 %v253
    %v574 = vunpack.c.l.b16 %v254
    %v575 = vunpack.c.l.b16 %v255
    %v576 = vunpack.c.l.b16 %v256
    %v577 = vunpack.c.l.b16 %v257
    %v578 = vunpack.c.l.b16 %v258
    %v579 = vunpack.c.l.b16 %v259
    %v580 = vunpack.c.l.b16 %v260
    %v581 = vunpack.c.l.b16 %v261
    %v582 = vunpack.c.l.b16 %v262
    %v583 = vunpack.c.l.b16 %v263
    %v584 = vunpack.c.l.b16 %v264
    %v585 = vunpack.c.l.b16 %v265
    %v586 = vunpack.c.l.b16 %v266
    %v587 = vunpack.c.l.b16 %v267
    %v588 = vunpack.c.l.b16 %v268
    %v589 = vunpack.c.l.b16 %v269
    %v590 = vunpack.c.l.b16 %v270
    %v591 = vunpack.c.l.b16 %v271
    %v592 = vunpack.c.l.b16 %v272
    %v593 = vunpack.c.l.b16 %v273
    %v594 = vunpack.c.l.b16 %v274
    %v595 = vunpack.c.l.b16 %v275
    %v596 = vunpack.c.l.b16 %v276
    %v597 = vunpack.c.l.b16 %v277
    %v598 = vunpack.c.l.b16 %v278
    %v599 = vunpack.c.l.b16 %v279
    %v600 = vunpack.c.l.b16 %v280
    %v601 = vunpack.c.l.b16 %v281
    %v602 = vunpack.c.l.b16 %v282
    %v603 = vunpack.c.l.b16 %v283
    %v604 = vunpack.c.l.b16 %v284
    %v605 = vunpack.c.l.b16 %v285
    %v606 = vunpack.c.l.b16 %v286
    %v607 = vunpack.c.l.b16 %v287
    %v608 = vunpack.c.l.b16 %v288
    %v609 = vunpack.c.l.b16 %v289
    %v610 = vunpack.c.l.b16 %v290
    %v611 = vunpack.c.l.b16 %v291
    %v612 = vunpack.c.l.b16 %v292
    %v613 = vunpack.c.l.b16 %v293
    %v614 = vunpack.c.l.b16 %v294
    %v615 = vunpack.c.l.b16 %v295
    %v616 = vunpack.c.l.b16 %v296
    %v617 = vunpack.c.l.b16 %v297
    %v618 = vunpack.c.l.b16 %v298
    %v619 = vunpack.c.l.b16 %v299
    %v620 = vunpack.c.l.b16 %v300
    %v621 = vunpack.c.l.b16 %v301
    %v622 = vunpack.c.l.b16 %v302
    %v623 = vunpack.c.l.b16 %v303
    %v624 = vunpack.c.l.b16 %v304
    %v625 = vunpack.c.l.b16 %v305
    %v626 = vunpack.c.l.b16 %v306
    %v627 = vunpack.c.l.b16 %v307
    %v628 = vpack.c.b16 %v501, %v500
    %v629 = vpack.c.b16 %v503, %v502
    %v630 = vpack.c.b16 %v505, %v504
    %v631 = vpack.c.b16 %v507, %v506
    %v632 = vpack.c.b16 %v509, %v508
    %v633 = vpack.c.b16 %v511, %v510
    %v634 = vpack.c.b16 %v513, %v512
    %v635 = vpack.c.b16 %v515, %v514
    %v636 = vpack.c.b16 %v517, %v516
    %v637 = vpack.c.b16 %v519, %v518
    %v638 = vpack.c.b16 %v521, %v520
    %v639 = vpack.c.b16 %v523, %v522
    %v640 = vpack.c.b16 %v525, %v524
    %v641 = vpack.c.b16 %v527, %v526
    %v642 = vpack.c.b16 %v529, %v528
    %v643 = vpack.c.b16 %v531, %v530
    %v644 = vpack.c.b16 %v533, %v532
    %v645 = vpack.c.b16 %v535, %v534
    %v646 = vpack.c.b16 %v537, %v536
    %v647 = vpack.c.b16 %v539, %v538
    %v648 = vpack.c.b16 %v541, %v540
    %v649 = vpack.c.b16 %v543, %v542
    %v650 = vpack.c.b16 %v545, %v544
    %v651 = vpack.c.b16 %v547, %v546
    %v652 = vpack.c.b16 %v549, %v548
    %v653 = vpack.c.b16 %v551, %v550
    %v654 = vpack.c.b16 %v553, %v552
    %v655 = vpack.c.b16 %v555, %v554
    %v656 = vpack.c.b16 %v557, %v556
    %v657 = vpack.c.b16 %v559, %v558
    %v658 = vpack.c.b16 %v561, %v560
    %v659 = vpack.c.b16 %v563, %v562
    %v660 = vpack.c.b16 %v565, %v564
    %v661 = vpack.c.b16 %v567, %v566
    %v662 = vpack.c.b16 %v569, %v568
    %v663 = vpack.c.b16 %v571, %v570
    %v664 = vpack.c.b16 %v573, %v572
    %v665 = vpack.c.b16 %v575, %v574
    %v666 = vpack.c.b16 %v577, %v576
    %v667 = vpack.c.b16 %v579, %v578
    %v668 = vpack.c.b16 %v581, %v580
    %v669 = vpack.c.b16 %v583, %v582
    %v670 = vpack.c.b16 %v585, %v584
    %v671 = vpack.c.b16 %v587, %v586
    %v672 = vpack.c.b16 %v589, %v588
    %v673 = vpack.c.b16 %v591, %v590
    %v674 = vpack.c.b16 %v593, %v592
    %v675 = vpack.c.b16 %v595, %v594
    %v676 = vpack.c.b16 %v597, %v596
    %v677 = vpack.c.b16 %v599, %v598
    %v678 = vpack.c.b16 %v601, %v600
    %v679 = vpack.c.b16 %v603, %v602
    %v680 = vpack.c.b16 %v605, %v604
    %v681 = vpack.c.b16 %v607, %v606
    %v682 = vpack.c.b16 %v609, %v608
    %v683 = vpack.c.b16 %v611, %v610
    %v684 = vpack.c.b16 %v613, %v612
    %v685 = vpack.c.b16 %v615, %v614
    %v686 = vpack.c.b16 %v617, %v616
    %v687 = vpack.c.b16 %v619, %v618
    %v688 = vpack.c.b16 %v621, %v620
    %v689 = vpack.c.b16 %v623, %v622
    %v690 = vpack.c.b16 %v625, %v624
    %v691 = vpack.c.b16 %v627, %v626
    %756 = vmatprep.subr.bf16.mxu0 0
    %757 = vmatpush1.bf16.msra.mxu0 %v635
    %758 = vmatprep.subr.bf16.mxu0 0
    %759 = vmatpush1.bf16.msra.mxu0 %v634
    %760 = vmatprep.subr.bf16.mxu0 0
    %761 = vmatpush1.bf16.msra.mxu0 %v633
    %762 = vmatprep.subr.bf16.mxu0 0
    %763 = vmatpush1.bf16.msra.mxu0 %v632
    %764 = vmatprep.subr.bf16.mxu0 0
    %765 = vmatpush1.bf16.msra.mxu0 %v631
    %766 = vmatprep.subr.bf16.mxu0 0
    %767 = vmatpush1.bf16.msra.mxu0 %v630
    %768 = vmatprep.subr.bf16.mxu0 0
    %769 = vmatpush1.bf16.msra.mxu0 %v629
    %770 = vmatprep.subr.bf16.mxu0 0
    %771 = vmatpush1.bf16.msra.mxu0 %v628
    %772 = vmatprep.subr.bf16.mxu0 0
    %773 = vmatpush2.bf16.msra.mxu0 %v643
    %774 = vmatprep.subr.bf16.mxu0 0
    %775 = vmatpush2.bf16.msra.mxu0 %v642
    %776 = vmatprep.subr.bf16.mxu0 0
    %777 = vmatpush2.bf16.msra.mxu0 %v641
    %778 = vmatprep.subr.bf16.mxu0 0
    %779 = vmatpush2.bf16.msra.mxu0 %v640
    %780 = vmatprep.subr.bf16.mxu0 0
    %781 = vmatpush2.bf16.msra.mxu0 %v639
    %782 = vmatprep.subr.bf16.mxu0 0
    %783 = vmatpush2.bf16.msra.mxu0 %v638
    %784 = vmatprep.subr.bf16.mxu0 0
    %785 = vmatpush2.bf16.msra.mxu0 %v637
    %786 = vmatprep.subr.bf16.mxu0 0
    %787 = vmatpush2.bf16.msra.mxu0 %v636
    %788 = vmatprep.mubr.bf16.mxu0 %v357
    %789 = vmatmul.mubr.bf16.gmra.mxu0 %v356
    %v790 = vpop.f32.mrf.mxu0
    %v791 = vadd.f32 %v313, %v790
    %v792 = vpop.f32.mrf.mxu0
    %v793 = vpop.f32.mrf.mxu0
    %v794 = vpop.f32.mrf.mxu0
    %795 = vdwg.mxu0
    %796 = vmatprep.subr.bf16.mxu0 0
    %797 = vmatpush1.bf16.msra.mxu0 %v651
    %798 = vmatprep.subr.bf16.mxu0 0
    %799 = vmatpush1.bf16.msra.mxu0 %v650
    %800 = vmatprep.subr.bf16.mxu0 0
    %801 = vmatpush1.bf16.msra.mxu0 %v649
    %802 = vmatprep.subr.bf16.mxu0 0
    %803 = vmatpush1.bf16.msra.mxu0 %v648
    %804 = vmatprep.subr.bf16.mxu0 0
    %805 = vmatpush1.bf16.msra.mxu0 %v647
    %806 = vmatprep.subr.bf16.mxu0 0
    %807 = vmatpush1.bf16.msra.mxu0 %v646
    %808 = vmatprep.subr.bf16.mxu0 0
    %809 = vmatpush1.bf16.msra.mxu0 %v645
    %810 = vmatprep.subr.bf16.mxu0 0
    %811 = vmatpush1.bf16.msra.mxu0 %v644
    %812 = vmatprep.subr.bf16.mxu0 0
    %813 = vmatpush2.bf16.msra.mxu0 %v659
    %814 = vmatprep.subr.bf16.mxu0 0
    %815 = vmatpush2.bf16.msra.mxu0 %v658
    %816 = vmatprep.subr.bf16.mxu0 0
    %817 = vmatpush2.bf16.msra.mxu0 %v657
    %818 = vmatprep.subr.bf16.mxu0 0
    %819 = vmatpush2.bf16.msra.mxu0 %v656
    %820 = vmatprep.subr.bf16.mxu0 0
    %821 = vmatpush2.bf16.msra.mxu0 %v655
    %822 = vmatprep.subr.bf16.mxu0 0
    %823 = vmatpush2.bf16.msra.mxu0 %v654
    %824 = vmatprep.subr.bf16.mxu0 0
    %825 = vmatpush2.bf16.msra.mxu0 %v653
    %826 = vmatprep.subr.bf16.mxu0 0
    %827 = vmatpush2.bf16.msra.mxu0 %v652
    %828 = vmatprep.mubr.bf16.mxu0 %v359
    %829 = vmatmul.mubr.bf16.gmra.mxu0 %v358
    %v830 = vpop.f32.mrf.mxu0
    %v831 = vadd.f32 %v791, %v830
    %v832 = vpop.f32.mrf.mxu0
    %v833 = vpop.f32.mrf.mxu0
    %v834 = vpop.f32.mrf.mxu0
    %835 = vdwg.mxu0
    %836 = vmatprep.subr.bf16.mxu0 0
    %837 = vmatpush1.bf16.msra.mxu0 %v667
    %838 = vmatprep.subr.bf16.mxu0 0
    %839 = vmatpush1.bf16.msra.mxu0 %v666
    %840 = vmatprep.subr.bf16.mxu0 0
    %841 = vmatpush1.bf16.msra.mxu0 %v665
    %842 = vmatprep.subr.bf16.mxu0 0
    %843 = vmatpush1.bf16.msra.mxu0 %v664
    %844 = vmatprep.subr.bf16.mxu0 0
    %845 = vmatpush1.bf16.msra.mxu0 %v663
    %846 = vmatprep.subr.bf16.mxu0 0
    %847 = vmatpush1.bf16.msra.mxu0 %v662
    %848 = vmatprep.subr.bf16.mxu0 0
    %849 = vmatpush1.bf16.msra.mxu0 %v661
    %850 = vmatprep.subr.bf16.mxu0 0
    %851 = vmatpush1.bf16.msra.mxu0 %v660
    %852 = vmatprep.subr.bf16.mxu0 0
    %853 = vmatpush2.bf16.msra.mxu0 %v675
    %854 = vmatprep.subr.bf16.mxu0 0
    %855 = vmatpush2.bf16.msra.mxu0 %v674
    %856 = vmatprep.subr.bf16.mxu0 0
    %857 = vmatpush2.bf16.msra.mxu0 %v673
    %858 = vmatprep.subr.bf16.mxu0 0
    %859 = vmatpush2.bf16.msra.mxu0 %v672
    %860 = vmatprep.subr.bf16.mxu0 0
    %861 = vmatpush2.bf16.msra.mxu0 %v671
    %862 = vmatprep.subr.bf16.mxu0 0
    %863 = vmatpush2.bf16.msra.mxu0 %v670
    %864 = vmatprep.subr.bf16.mxu0 0
    %865 = vmatpush2.bf16.msra.mxu0 %v669
    %866 = vmatprep.subr.bf16.mxu0 0
    %867 = vmatpush2.bf16.msra.mxu0 %v668
    %868 = vmatprep.mubr.bf16.mxu0 %v361
    %869 = vmatmul.mubr.bf16.gmra.mxu0 %v360
    %v870 = vpop.f32.mrf.mxu0
    %v871 = vadd.f32 %v831, %v870
    %v872 = vpop.f32.mrf.mxu0
    %v873 = vpop.f32.mrf.mxu0
    %v874 = vpop.f32.mrf.mxu0
    %875 = vdwg.mxu0
    %876 = vmatprep.subr.bf16.mxu0 0
    %877 = vmatpush1.bf16.msra.mxu0 %v683
    %878 = vmatprep.subr.bf16.mxu0 0
    %879 = vmatpush1.bf16.msra.mxu0 %v682
    %880 = vmatprep.subr.bf16.mxu0 0
    %881 = vmatpush1.bf16.msra.mxu0 %v681
    %882 = vmatprep.subr.bf16.mxu0 0
    %883 = vmatpush1.bf16.msra.mxu0 %v680
    %884 = vmatprep.subr.bf16.mxu0 0
    %885 = vmatpush1.bf16.msra.mxu0 %v679
    %886 = vmatprep.subr.bf16.mxu0 0
    %887 = vmatpush1.bf16.msra.mxu0 %v678
    %888 = vmatprep.subr.bf16.mxu0 0
    %889 = vmatpush1.bf16.msra.mxu0 %v677
    %890 = vmatprep.subr.bf16.mxu0 0
    %891 = vmatpush1.bf16.msra.mxu0 %v676
    %892 = vmatprep.subr.bf16.mxu0 0
    %893 = vmatpush2.bf16.msra.mxu0 %v691
    %894 = vmatprep.subr.bf16.mxu0 0
    %895 = vmatpush2.bf16.msra.mxu0 %v690
    %896 = vmatprep.subr.bf16.mxu0 0
    %897 = vmatpush2.bf16.msra.mxu0 %v689
    %898 = vmatprep.subr.bf16.mxu0 0
    %899 = vmatpush2.bf16.msra.mxu0 %v688
    %900 = vmatprep.subr.bf16.mxu0 0
    %901 = vmatpush2.bf16.msra.mxu0 %v687
    %902 = vmatprep.subr.bf16.mxu0 0
    %903 = vmatpush2.bf16.msra.mxu0 %v686
    %904 = vmatprep.subr.bf16.mxu0 0
    %905 = vmatpush2.bf16.msra.mxu0 %v685
    %906 = vmatprep.subr.bf16.mxu0 0
    %907 = vmatpush2.bf16.msra.mxu0 %v684
    %908 = vmatprep.mubr.bf16.mxu0 %v363
    %909 = vmatmul.mubr.bf16.gmra.mxu0 %v362
    %v910 = vpop.f32.mrf.mxu0
    %v911 = vadd.f32 %v871, %v910
    %v912 = vpop.f32.mrf.mxu0
    %v913 = vpop.f32.mrf.mxu0
    %v914 = vpop.f32.mrf.mxu0
    %915 = vdwg.mxu0
    %916 = vst [vmem:[#allocation7] sm:$0x3] %v911
    // Predicated region
    $region22: #{ft_net_swin_forward.1} parent=1 // pred_check
      _
    $region23: #{ft_net_swin_forward.1} parent=1 // pred_check_branch
      %918 = sbr.rel (0) target = $region25
    $region24: #{ft_net_swin_forward.1} parent=1 // pred_region
      %s920 = ssub.s32 32, 32
      %921 = vsyncadd [#allocation4], %s920
      %s923 = sshll.u32 [#allocation7], 4
      %s924 = int_to_ptr.vmem [resolvable:$true] %s923
      %926 = dma.vmem_to_hbm [thread:$0]  %s924, 32, %s3, [#allocation4]
    $region25: #{ft_net_swin_forward.1} parent=1 // pred_fallthru
      _
    // Predicated region
    $region26: #{ft_net_swin_forward.1} parent=1 // pred_check
      _
    $region27: #{ft_net_swin_forward.1} parent=1 // pred_check_branch
      %928 = sbr.rel (0) target = $region29
    $region28: #{ft_net_swin_forward.1} parent=1 // pred_region
      %929 = dma.done [#allocation4], 32
    $region29: #{ft_net_swin_forward.1} parent=1 // pred_fallthru
      _
    %930 = vsyncpa [#allocation3], 1
    %931 = vsyncpa [#allocation6], 1
    %932 = vsyncpa [#allocation4], 1

</llo_original>
